<compile_context>
chip_gen: v6e
topology: v6e:2x2x1
jax: 0.10.0
libtpu: 0.0.40
codegen_flags: <defaults>
</compile_context>

<pallas_src>
import jax
import jax.numpy as jnp
from jax.experimental import pallas as pl
from jax.experimental.pallas import tpu as pltpu

IN_DIM = 164     # nn.Linear(164, 164)
HID_DIM = 164
HID_PAD = 256    # hidden width padded to full lanes (2 * 128)
OUT_DIM = 1
MAX_TB = 1024    # batch-tile cap; ~1.5 MiB of live blocks, safe for v7x's 64 MiB VMEM


def mlp_kernel(x_ref, w1_ref, b1_ref, w2r_ref, b2_ref, o_ref):
    # x_ref:   (TB, IN_DIM)      bf16
    # w1_ref:  (IN_DIM, HID_PAD) bf16   (cols >= HID_DIM are zero)
    # b1_ref:  (1, HID_PAD)      f32    (cols >= HID_DIM are zero)
    # w2r_ref: (1, HID_PAD)      f32    (W2 column laid out as a zero-padded row)
    # b2_ref:  (1, 1)            f32
    # o_ref:   (TB, 1)           f32
    h = jnp.dot(x_ref[...], w1_ref[...],
                preferred_element_type=jnp.float32)      # MXU: bf16 in, f32 accumulate
    h = jnp.maximum(h + b1_ref[...], 0.0)                # VPU: bias + ReLU
    # Second linear (HID -> 1) on VPU + XLU instead of an N=1 MXU matmul.
    y = jnp.sum(h * w2r_ref[...], axis=-1, keepdims=True)  # (TB, 1)
    o_ref[...] = (y + b2_ref[...]).astype(o_ref.dtype)


def prepare_params(w1, b1, w2, b2):
    """One-time layout prep (call once, not per forward): pre-transposed,
    lane-padded (164 -> 256), bf16-cast weights for the kernel."""
    w1p = jnp.zeros((IN_DIM, HID_PAD), jnp.float32).at[:, :HID_DIM].set(
        w1.astype(jnp.float32)).astype(jnp.bfloat16)
    b1p = jnp.zeros((1, HID_PAD), jnp.float32).at[:, :HID_DIM].set(
        jnp.reshape(b1, (1, HID_DIM)).astype(jnp.float32))
    w2r = jnp.zeros((1, HID_PAD), jnp.float32).at[:, :HID_DIM].set(
        jnp.reshape(w2, (1, HID_DIM)).astype(jnp.float32))
    b2p = jnp.reshape(b2, (1, 1)).astype(jnp.float32)
    return w1p, b1p, w2r, b2p


def _pick_batch_tile(B):
    tb = ((min(B, MAX_TB) + 7) // 8) * 8   # sublane multiple of 8
    return max(tb, 8)


def my_model_forward(x, params, *, tb=None):
    """Equivalent of My_model.forward: Linear(164,164) -> ReLU -> Linear(164,1) -> squeeze(1)."""
    w1p, b1p, w2r, b2p = params
    B = x.shape[0]
    if tb is None:
        tb = _pick_batch_tile(B)
    num_tiles = pl.cdiv(B, tb)
    Bp = num_tiles * tb

    xb = x.astype(jnp.bfloat16)
    if Bp != B:
        xb = jnp.pad(xb, ((0, Bp - B), (0, 0)))

    out = pl.pallas_call(
        mlp_kernel,
        out_shape=jax.ShapeDtypeStruct((Bp, OUT_DIM), jnp.float32),
        grid_spec=pltpu.PrefetchScalarGridSpec(
            num_scalar_prefetch=0,
            grid=(num_tiles,),
            in_specs=[
                pl.BlockSpec((tb, IN_DIM), lambda i: (i, 0)),        # streamed per tile
                pl.BlockSpec((IN_DIM, HID_PAD), lambda i: (0, 0)),   # VMEM-resident weights
                pl.BlockSpec((1, HID_PAD), lambda i: (0, 0)),
                pl.BlockSpec((1, HID_PAD), lambda i: (0, 0)),
                pl.BlockSpec((1, OUT_DIM), lambda i: (0, 0)),
            ],
            out_specs=pl.BlockSpec((tb, OUT_DIM), lambda i: (i, 0)),
        ),
        compiler_params=pltpu.CompilerParams(
            dimension_semantics=("parallel",),   # shard batch tiles across TCs (v7x megacore)
        ),
    )(xb, w1p, b1p, w2r, b2p)

    return out[:B, 0]   # squeeze(1) + drop batch padding


def init_params(key):
    """PyTorch nn.Linear default init: U(-1/sqrt(fan_in), 1/sqrt(fan_in))."""
    k1, k2, k3, k4 = jax.random.split(key, 4)
    bound1 = 1.0 / jnp.sqrt(jnp.float32(IN_DIM))
    w1 = jax.random.uniform(k1, (IN_DIM, HID_DIM), jnp.float32, -bound1, bound1)
    b1 = jax.random.uniform(k2, (HID_DIM,), jnp.float32, -bound1, bound1)
    bound2 = 1.0 / jnp.sqrt(jnp.float32(HID_DIM))
    w2 = jax.random.uniform(k3, (HID_DIM, OUT_DIM), jnp.float32, -bound2, bound2)
    b2 = jax.random.uniform(k4, (OUT_DIM,), jnp.float32, -bound2, bound2)
    return w1, b1, w2, b2


def reference(x, w1, b1, w2, b2):
    h = jnp.maximum(x @ w1 + b1.reshape(1, -1), 0.0)
    return (h @ w2 + b2.reshape(1, -1))[:, 0]


if __name__ == "__main__":
    key = jax.random.PRNGKey(0)
    kx, kx2, kp = jax.random.split(key, 3)

    w1, b1, w2, b2 = init_params(kp)
    params = prepare_params(w1, b1, w2, b2)

    # Small demo batch (matches the PyTorch module's (B, 164) input).
    B = 8
    x = jax.random.normal(kx, (B, IN_DIM), jnp.float32)
    y = my_model_forward(x, params)
    jax.block_until_ready(y)
    y_ref = reference(x, w1, b1, w2, b2)
    assert y.shape == (B,)
    assert jnp.allclose(y, y_ref, atol=3e-2, rtol=3e-2), \
        float(jnp.max(jnp.abs(y - y_ref)))

    # Exercise the tiled / pipelined path: multiple grid steps + batch padding.
    B2 = 300
    x2 = jax.random.normal(kx2, (B2, IN_DIM), jnp.float32)
    y2 = my_model_forward(x2, params, tb=128)
    jax.block_until_ready(y2)
    y2_ref = reference(x2, w1, b1, w2, b2)
    assert y2.shape == (B2,)
    assert jnp.allclose(y2, y2_ref, atol=3e-2, rtol=3e-2), \
        float(jnp.max(jnp.abs(y2 - y2_ref)))

    print("KERNEL_OK")
</pallas_src>

<mosaic_0001>
module attributes {stable_mosaic.version = 11 : i64} {
  func.func @mlp_kernel(%arg0: i32, %arg1: memref<8x164xbf16, #tpu.memory_space<vmem>>, %arg2: memref<164x256xbf16, #tpu.memory_space<vmem>>, %arg3: memref<1x256xf32, #tpu.memory_space<vmem>>, %arg4: memref<1x256xf32, #tpu.memory_space<vmem>>, %arg5: memref<1x1xf32, #tpu.memory_space<vmem>>, %arg6: memref<8x1xf32, #tpu.memory_space<vmem>>) attributes {dimension_semantics = [#tpu.dimension_semantics<parallel>], iteration_bounds = array<i64: 1>, scalar_prefetch = 0 : i64, scratch_operands = 0 : i64, tpu.core_type = #tpu.core_type<tc>, window_params = [{transform_indices = @transform_0, window_bounds = array<i64: 8, 164>}, {pipeline_mode = #tpu.pipeline_mode<synchronous>, transform_indices = @transform_1, window_bounds = array<i64: 164, 256>}, {pipeline_mode = #tpu.pipeline_mode<synchronous>, transform_indices = @transform_2, window_bounds = array<i64: 1, 256>}, {pipeline_mode = #tpu.pipeline_mode<synchronous>, transform_indices = @transform_3, window_bounds = array<i64: 1, 256>}, {pipeline_mode = #tpu.pipeline_mode<synchronous>, transform_indices = @transform_4, window_bounds = array<i64: 1, 1>}, {transform_indices = @transform_5, window_bounds = array<i64: 8, 1>}]} {
    %c0 = arith.constant 0 : index
    %c0_0 = arith.constant 0 : index
    %0 = vector.load %arg1[%c0, %c0_0] : memref<8x164xbf16, #tpu.memory_space<vmem>>, vector<8x164xbf16>
    %c0_1 = arith.constant 0 : index
    %c0_2 = arith.constant 0 : index
    %1 = vector.load %arg2[%c0_1, %c0_2] : memref<164x256xbf16, #tpu.memory_space<vmem>>, vector<164x256xbf16>
    %cst = arith.constant dense<0.000000e+00> : vector<8x256xf32>
    %2 = tpu.matmul %0, %1, %cst {dimension_numbers = #tpu.dot_dimension_numbers<[1], [0], [0], [1], [0, 0, 1, 1], [], []>} : vector<8x164xbf16>, vector<164x256xbf16>, vector<8x256xf32> -> vector<8x256xf32>
    %c0_3 = arith.constant 0 : index
    %c0_4 = arith.constant 0 : index
    %3 = vector.load %arg3[%c0_3, %c0_4] : memref<1x256xf32, #tpu.memory_space<vmem>>, vector<1x256xf32>
    %4 = vector.broadcast %3 : vector<1x256xf32> to vector<8x256xf32>
    %5 = arith.addf %2, %4 : vector<8x256xf32>
    %cst_5 = arith.constant 0.000000e+00 : f32
    %6 = vector.broadcast %cst_5 : f32 to vector<8x256xf32>
    %7 = arith.maximumf %5, %6 : vector<8x256xf32>
    %c0_6 = arith.constant 0 : index
    %c0_7 = arith.constant 0 : index
    %8 = vector.load %arg4[%c0_6, %c0_7] : memref<1x256xf32, #tpu.memory_space<vmem>>, vector<1x256xf32>
    %9 = vector.broadcast %8 : vector<1x256xf32> to vector<8x256xf32>
    %10 = arith.mulf %7, %9 : vector<8x256xf32>
    %cst_8 = arith.constant dense<0.000000e+00> : vector<8xf32>
    %11 = vector.multi_reduction <add>, %10, %cst_8 [1] : vector<8x256xf32> to vector<8xf32>
    %12 = vector.shape_cast %11 : vector<8xf32> to vector<8x1xf32>
    %c0_9 = arith.constant 0 : index
    %c0_10 = arith.constant 0 : index
    %13 = vector.load %arg5[%c0_9, %c0_10] : memref<1x1xf32, #tpu.memory_space<vmem>>, vector<1x1xf32>
    %14 = vector.broadcast %13 : vector<1x1xf32> to vector<8x1xf32>
    %15 = arith.addf %12, %14 : vector<8x1xf32>
    %c0_11 = arith.constant 0 : index
    %c0_12 = arith.constant 0 : index
    %16 = vector.load %arg6[%c0_11, %c0_12] : memref<8x1xf32, #tpu.memory_space<vmem>>, vector<8x1xf32>
    tpu.vector_store %arg6[%c0_11, %c0_12], %15 {strides = array<i32>} : memref<8x1xf32, #tpu.memory_space<vmem>>, vector<8x1xf32>,
    return
  }
  func.func @transform_0(%arg0: i32) -> (i32, i32) {
    %c0_i32 = arith.constant 0 : i32
    %c0_i32_0 = arith.constant 0 : i32
    return %arg0, %c0_i32 : i32, i32
  }
  func.func @transform_1(%arg0: i32) -> (i32, i32) {
    %c0_i32 = arith.constant 0 : i32
    %c0_i32_0 = arith.constant 0 : i32
    %c0_i32_1 = arith.constant 0 : i32
    return %c0_i32, %c0_i32_0 : i32, i32
  }
  func.func @transform_2(%arg0: i32) -> (i32, i32) {
    %c0_i32 = arith.constant 0 : i32
    %c0_i32_0 = arith.constant 0 : i32
    %c0_i32_1 = arith.constant 0 : i32
    return %c0_i32, %c0_i32_0 : i32, i32
  }
  func.func @transform_3(%arg0: i32) -> (i32, i32) {
    %c0_i32 = arith.constant 0 : i32
    %c0_i32_0 = arith.constant 0 : i32
    %c0_i32_1 = arith.constant 0 : i32
    return %c0_i32, %c0_i32_0 : i32, i32
  }
  func.func @transform_4(%arg0: i32) -> (i32, i32) {
    %c0_i32 = arith.constant 0 : i32
    %c0_i32_0 = arith.constant 0 : i32
    %c0_i32_1 = arith.constant 0 : i32
    return %c0_i32, %c0_i32_0 : i32, i32
  }
  func.func @transform_5(%arg0: i32) -> (i32, i32) {
    %c0_i32 = arith.constant 0 : i32
    %c0_i32_0 = arith.constant 0 : i32
    return %arg0, %c0_i32 : i32, i32
  }
}

</mosaic_0001>

<llo_original>
// kernel: tpu_custom_call.1
$region0: #{tpu_custom_call.1}
  #allocation0 [shape = 'u32[]', space=smem, size = 0x4, offset = 0x4, fixed_abs, tag = 'smem constant byte address 0x4 - core index']
  #allocation1 [shape = 'u32[144,128]{1,0:T(1,128)}', space=vmem, size = 0x12000, scoped, tag = 'internal scratch']
  #allocation2 [shape = 'f32[1,1]{1,0:T(1,128)S(1)}', space=vmem, size = 0x200, scoped, tag = 'scoped memory for tpu_custom_call.1']
  %s0 = inlined_call_operand.hbm [shape: bf16[8,164], index: 0, kind: input, shape index: {}]
  %s1 = inlined_call_operand.hbm [shape: bf16[164,256], index: 1, kind: input, shape index: {}]
  %s2 = inlined_call_operand.vmem [shape: f32[1,256], index: 2, kind: input, shape index: {}]
  %s3 = inlined_call_operand.vmem [shape: f32[1,256], index: 3, kind: input, shape index: {}]
  %s4 = inlined_call_operand.<no memory space> [shape: f32[1,1], index: 4, kind: input, shape index: {}]
  %s5 = inlined_call_operand.vmem [shape: f32[8,1], index: 5, kind: output, shape index: {}]
  %s6 = sld [smem:[#allocation0]]
  $region38: #{tpu_custom_call.1} parent=0
    _
  %s8 = ssub.s32 1, %s6
  %s9 = scalar_select 0, %s8, %s6
  %v10 = vstv %s4
  %11 = vst [vmem:[#allocation2] sm:$0x1] %v10
  $region1: #{tpu_custom_call.1} parent=0
    #allocation3 [shape = 'u8[4096]{0}', space=vmem, size = 0x1000, scoped, tag = 'input window, operand 0, single buffered']
    #allocation4 [shape = 's32[1]{0}', space=sflag, size = 0x4, scoped, tag = 'scoped memory for tpu_custom_call.1']
    #allocation5 [shape = 'u8[86016]{0}', space=vmem, size = 0x15000, scoped, tag = 'input window, operand 1, single buffered']
    #allocation6 [shape = 's32[1]{0}', space=sflag, size = 0x4, scoped, tag = 'scoped memory for tpu_custom_call.1']
    %12 = vsyncpa [#allocation4], 0
    %13 = vsyncpa [#allocation6], 0
    // Predicated region
    $region2: #{tpu_custom_call.1} parent=1 // pred_check
      _
    $region3: #{tpu_custom_call.1} parent=1 // pred_check_branch
      %15 = sbr.rel (0) target = $region5
    $region4: #{tpu_custom_call.1} parent=1 // pred_region
      %s17 = ssub.s32 128, 128
      %18 = vsyncadd [#allocation4], %s17
      %s20 = sshll.u32 [#allocation3], 4
      %s21 = int_to_ptr.vmem [resolvable:$true] %s20
      %23 = dma.hbm_to_vmem [thread:$0]  %s0, 128, %s21, [#allocation4]
    $region5: #{tpu_custom_call.1} parent=1 // pred_fallthru
      _
    // Predicated region
    $region6: #{tpu_custom_call.1} parent=1 // pred_check
      _
    $region7: #{tpu_custom_call.1} parent=1 // pred_check_branch
      %25 = sbr.rel (0) target = $region9
    $region8: #{tpu_custom_call.1} parent=1 // pred_region
      %s27 = ssub.s32 2688, 2688
      %28 = vsyncadd [#allocation6], %s27
      %s29 = sshll.u32 [#allocation5], 4
      %s30 = int_to_ptr.vmem [resolvable:$true] %s29
      %35 = dma.hbm_to_vmem [thread:$0]  %s1, 2688, %s30, [#allocation6], 128, 128, 8
    $region9: #{tpu_custom_call.1} parent=1 // pred_fallthru
      _
    // Predicated region
    $region10: #{tpu_custom_call.1} parent=1 // pred_check
      _
    $region11: #{tpu_custom_call.1} parent=1 // pred_check_branch
      %37 = sbr.rel (0) target = $region13
    $region12: #{tpu_custom_call.1} parent=1 // pred_region
      _
    $region13: #{tpu_custom_call.1} parent=1 // pred_fallthru
      _
    // Predicated region
    $region14: #{tpu_custom_call.1} parent=1 // pred_check
      _
    $region15: #{tpu_custom_call.1} parent=1 // pred_check_branch
      %39 = sbr.rel (0) target = $region17
    $region16: #{tpu_custom_call.1} parent=1 // pred_region
      _
    $region17: #{tpu_custom_call.1} parent=1 // pred_fallthru
      _
    // Predicated region
    $region18: #{tpu_custom_call.1} parent=1 // pred_check
      _
    $region19: #{tpu_custom_call.1} parent=1 // pred_check_branch
      %41 = sbr.rel (0) target = $region21
    $region20: #{tpu_custom_call.1} parent=1 // pred_region
      _
    $region21: #{tpu_custom_call.1} parent=1 // pred_fallthru
      _
    // Predicated region
    $region22: #{tpu_custom_call.1} parent=1 // pred_check
      _
    $region23: #{tpu_custom_call.1} parent=1 // pred_check_branch
      %43 = sbr.rel (0) target = $region25
    $region24: #{tpu_custom_call.1} parent=1 // pred_region
      %44 = dma.done [#allocation4], 128
    $region25: #{tpu_custom_call.1} parent=1 // pred_fallthru
      _
    // Predicated region
    $region26: #{tpu_custom_call.1} parent=1 // pred_check
      _
    $region27: #{tpu_custom_call.1} parent=1 // pred_check_branch
      %46 = sbr.rel (0) target = $region29
    $region28: #{tpu_custom_call.1} parent=1 // pred_region
      %47 = dma.done [#allocation6], 2688
    $region29: #{tpu_custom_call.1} parent=1 // pred_fallthru
      _
    %v49 = vld [vmem:[#allocation3] sm:$0xff]
    %v50 = vld [vmem:[#allocation5] sm:$0xff]
    %v51 = vld [vmem:[#allocation5 + $0x8] sm:$0xff]
    %v52 = vld [vmem:[#allocation5 + $0x10] sm:$0xff]
    %v53 = vld [vmem:[#allocation5 + $0x18] sm:$0xff]
    %v54 = vld [vmem:[#allocation5 + $0x20] sm:$0xff]
    %v55 = vld [vmem:[#allocation5 + $0x28] sm:$0xff]
    %v56 = vld [vmem:[#allocation5 + $0x30] sm:$0xff]
    %v57 = vld [vmem:[#allocation5 + $0x38] sm:$0xff]
    %v58 = vld [vmem:[#allocation5 + $0x40] sm:$0xff]
    %v59 = vld [vmem:[#allocation5 + $0x48] sm:$0xff]
    %v60 = vld [vmem:[#allocation5 + $0x50] sm:$0xff]
    %v61 = vld [vmem:[#allocation5 + $0x58] sm:$0xff]
    %v62 = vld [vmem:[#allocation5 + $0x60] sm:$0xff]
    %v63 = vld [vmem:[#allocation5 + $0x68] sm:$0xff]
    %v64 = vld [vmem:[#allocation5 + $0x70] sm:$0xff]
    %v65 = vld [vmem:[#allocation5 + $0x78] sm:$0xff]
    %v66 = vld [vmem:[#allocation5 + $0x80] sm:$0xff]
    %v67 = vld [vmem:[#allocation5 + $0x88] sm:$0xff]
    %v68 = vld [vmem:[#allocation5 + $0x90] sm:$0xff]
    %v69 = vld [vmem:[#allocation5 + $0x98] sm:$0xff]
    %v70 = vld [vmem:[#allocation5 + $0xa0] sm:$0x33]
    %v71 = vld [vmem:[%s2] sm:$0x3]
    %v73 = vlaneseq
    %v74 = vshrl.u32 %v73, 7
    %v75 = vsub.s32 0, %v74
    %v76 = vrot.slane %v71, %v75
    %v77 = vlaneseq
    %v78 = vshrl.u32 %v77, 7
    %v79 = vsub.s32 1, %v78
    %v80 = vrot.slane %v71, %v79
    %v84 = vunpack.c.l.b16 %v49
    %v85 = vunpack.c.h.b16 %v49
    %v86 = vpack.c.b16 %v84, %v84
    %v87 = vpack.c.b16 %v85, %v85
    %v110 = vunpack.c.l.b16 %v50
    %v111 = vunpack.c.h.b16 %v50
    %v112 = vunpack.c.l.b16 %v51
    %v113 = vunpack.c.h.b16 %v51
    %v114 = vunpack.c.l.b16 %v52
    %v115 = vunpack.c.h.b16 %v52
    %v116 = vunpack.c.l.b16 %v53
    %v117 = vunpack.c.h.b16 %v53
    %v118 = vunpack.c.l.b16 %v54
    %v119 = vunpack.c.h.b16 %v54
    %v120 = vunpack.c.l.b16 %v55
    %v121 = vunpack.c.h.b16 %v55
    %v122 = vunpack.c.l.b16 %v56
    %v123 = vunpack.c.h.b16 %v56
    %v124 = vunpack.c.l.b16 %v57
    %v125 = vunpack.c.h.b16 %v57
    %v126 = vunpack.c.l.b16 %v58
    %v127 = vunpack.c.h.b16 %v58
    %v128 = vunpack.c.l.b16 %v59
    %v129 = vunpack.c.h.b16 %v59
    %v130 = vunpack.c.l.b16 %v60
    %v131 = vunpack.c.h.b16 %v60
    %v132 = vunpack.c.l.b16 %v61
    %v133 = vunpack.c.h.b16 %v61
    %v134 = vunpack.c.l.b16 %v62
    %v135 = vunpack.c.h.b16 %v62
    %v136 = vunpack.c.l.b16 %v63
    %v137 = vunpack.c.h.b16 %v63
    %v138 = vunpack.c.l.b16 %v64
    %v139 = vunpack.c.h.b16 %v64
    %v140 = vunpack.c.l.b16 %v65
    %v141 = vunpack.c.h.b16 %v65
    %v142 = vunpack.c.l.b16 %v66
    %v143 = vunpack.c.h.b16 %v66
    %v144 = vunpack.c.l.b16 %v67
    %v145 = vunpack.c.h.b16 %v67
    %v146 = vunpack.c.l.b16 %v68
    %v147 = vunpack.c.h.b16 %v68
    %v148 = vunpack.c.l.b16 %v69
    %v149 = vunpack.c.h.b16 %v69
    %v150 = vunpack.c.l.b16 %v70
    %v151 = vunpack.c.h.b16 %v70
    %v152 = vpack.c.b16 %v112, %v110
    %v153 = vpack.c.b16 %v113, %v111
    %v154 = vpack.c.b16 %v116, %v114
    %v155 = vpack.c.b16 %v117, %v115
    %v156 = vpack.c.b16 %v120, %v118
    %v157 = vpack.c.b16 %v121, %v119
    %v158 = vpack.c.b16 %v124, %v122
    %v159 = vpack.c.b16 %v125, %v123
    %v160 = vpack.c.b16 %v128, %v126
    %v161 = vpack.c.b16 %v129, %v127
    %v162 = vpack.c.b16 %v132, %v130
    %v163 = vpack.c.b16 %v133, %v131
    %v164 = vpack.c.b16 %v136, %v134
    %v165 = vpack.c.b16 %v137, %v135
    %v166 = vpack.c.b16 %v140, %v138
    %v167 = vpack.c.b16 %v141, %v139
    %v168 = vpack.c.b16 %v144, %v142
    %v169 = vpack.c.b16 %v145, %v143
    %v170 = vpack.c.b16 %v148, %v146
    %v171 = vpack.c.b16 %v149, %v147
    %v172 = vpack.c.b16 %v150, %v150
    %v173 = vpack.c.b16 %v151, %v151
    %vm194 = vcmask 293888
    %v196 = vsel %vm194, %v87, 0
    %vm198 = vcmask 1041408
    %v200 = vsel %vm198, %v172, 0
    %v203 = vsel %vm198, %v173, 0
    %205 = vmatprep.subr.bf16.mxu0 %v167
    %206 = vmatpush1.bf16.msra.mxu0 %v166
    %207 = vmatprep.subr.bf16.mxu0 %v165
    %208 = vmatpush1.bf16.msra.mxu0 %v164
    %209 = vmatprep.subr.bf16.mxu0 %v163
    %210 = vmatpush1.bf16.msra.mxu0 %v162
    %211 = vmatprep.subr.bf16.mxu0 %v161
    %212 = vmatpush1.bf16.msra.mxu0 %v160
    %213 = vmatprep.subr.bf16.mxu0 %v159
    %214 = vmatpush1.bf16.msra.mxu0 %v158
    %215 = vmatprep.subr.bf16.mxu0 %v157
    %216 = vmatpush1.bf16.msra.mxu0 %v156
    %217 = vmatprep.subr.bf16.mxu0 %v155
    %218 = vmatpush1.bf16.msra.mxu0 %v154
    %219 = vmatprep.subr.bf16.mxu0 %v153
    %220 = vmatpush1.bf16.msra.mxu0 %v152
    %221 = vmatprep.subr.bf16.mxu0 0
    %222 = vmatpush2.bf16.msra.mxu0 0
    %223 = vmatprep.subr.bf16.mxu0 0
    %224 = vmatpush2.bf16.msra.mxu0 0
    %225 = vmatprep.subr.bf16.mxu0 0
    %226 = vmatpush2.bf16.msra.mxu0 0
    %227 = vmatprep.subr.bf16.mxu0 0
    %228 = vmatpush2.bf16.msra.mxu0 0
    %229 = vmatprep.subr.bf16.mxu0 0
    %230 = vmatpush2.bf16.msra.mxu0 0
    %231 = vmatprep.subr.bf16.mxu0 %v203
    %232 = vmatpush2.bf16.msra.mxu0 %v200
    %233 = vmatprep.subr.bf16.mxu0 %v171
    %234 = vmatpush2.bf16.msra.mxu0 %v170
    %235 = vmatprep.subr.bf16.mxu0 %v169
    %236 = vmatpush2.bf16.msra.mxu0 %v168
    %237 = vmatprep.mubr.bf16.mxu0 %v196
    %238 = vmatmul.mubr.bf16.gmra.mxu0 %v86
    %v239 = vpop.f32.mrf.mxu0
    %v240 = vadd.f32 %v76, %v239
    %v241 = vpop.f32.mrf.mxu0
    %v242 = vadd.f32 %v80, %v241
    %v243 = vpop.f32.mrf.mxu0
    %v244 = vpop.f32.mrf.mxu0
    %245 = vdwg.mxu0
    %v246 = vmax.f32 %v240, 0.0
    %v247 = vmax.f32 %v242, 0.0
    %v248 = vld [vmem:[%s3] sm:$0x3]
    %v250 = vlaneseq
    %v251 = vshrl.u32 %v250, 7
    %v252 = vsub.s32 0, %v251
    %v253 = vrot.slane %v248, %v252
    %v254 = vlaneseq
    %v255 = vshrl.u32 %v254, 7
    %v256 = vsub.s32 1, %v255
    %v257 = vrot.slane %v248, %v256
    %v260 = vmul.f32 %v246, %v253
    %v261 = vmul.f32 %v247, %v257
    %v262 = vadd.f32 %v260, %v261
    %263 = vadd.xlane.f32.xlu0 %v262
    %v264 = vpop.xlane.xlu0 %263
    %v265 = vld [vmem:[#allocation2] sm:$0x1]
    %v267 = vlaneseq
    %v268 = vshrl.u32 %v267, 7
    %v269 = vsub.s32 0, %v268
    %v270 = vrot.slane %v265, %v269
    %v272 = vadd.f32 %v264, %v270
    %vm273 = vcmask 7168
    %274 = vst.msk [vmem:[%s5] sm:$0xff] %vm273, %v272
    // Predicated region
    $region30: #{tpu_custom_call.1} parent=1 // pred_check
      _
    $region31: #{tpu_custom_call.1} parent=1 // pred_check_branch
      %276 = sbr.rel (0) target = $region33
    $region32: #{tpu_custom_call.1} parent=1 // pred_region
      _
    $region33: #{tpu_custom_call.1} parent=1 // pred_fallthru
      _
    // Predicated region
    $region34: #{tpu_custom_call.1} parent=1 // pred_check
      _
    $region35: #{tpu_custom_call.1} parent=1 // pred_check_branch
      %278 = sbr.rel (0) target = $region37
    $region36: #{tpu_custom_call.1} parent=1 // pred_region
      _
    $region37: #{tpu_custom_call.1} parent=1 // pred_fallthru
      _
    %279 = vsyncpa [#allocation4], 1
    %280 = vsyncpa [#allocation6], 1

</llo_original>
